<compile_context>
chip_gen: v5e
topology: v5e:2x2
jax: 0.10.0
libtpu: 0.0.40
codegen_flags: <defaults>
</compile_context>

<pallas_src>
import functools
import math

import jax
import jax.numpy as jnp
from jax.experimental import pallas as pl
from jax.experimental.pallas import tpu as pltpu

_MiB = 1024 * 1024


def _align_up(v, m):
    return ((v + m - 1) // m) * m


# --------------------------------------------------------------------------
# PE buffer construction (identical to the PyTorch __init__, odd-E safe).
# --------------------------------------------------------------------------
def make_positional_encoding(max_len, emb_size, dtype=jnp.float32):
    position = jnp.arange(max_len, dtype=jnp.float32)[:, None]               # (L, 1)
    div_term = jnp.exp(
        jnp.arange(0, emb_size, 2, dtype=jnp.float32)
        * (-math.log(10000.0) / emb_size)
    )                                                                         # (ceil(E/2),)
    angles = position * div_term                                              # (L, ceil(E/2))
    pe = jnp.zeros((max_len, emb_size), dtype=jnp.float32)
    pe = pe.at[:, 0::2].set(jnp.sin(angles))
    pe = pe.at[:, 1::2].set(jnp.cos(angles[:, : emb_size // 2]))
    return pe[:, None, :].astype(dtype)                                       # (L, 1, E)


# --------------------------------------------------------------------------
# Kernels
# --------------------------------------------------------------------------
def _add_pe_store(x_ref, o_ref, pe, *, batch, emb):
    """Add a (TS, E) pe tile onto a (TS, B*E) x tile with lane-dense stores."""
    if batch == 1:
        o_ref[...] = x_ref[...] + pe
    elif emb % 128 == 0 and batch <= 8:
        # Lane-aligned chunk stores: each chunk starts at a multiple of 128
        # lanes -> unmasked full-rate vst.  Unroll is bounded (batch <= 8).
        for b in range(batch):
            col = slice(b * emb, (b + 1) * emb)
            o_ref[:, col] = x_ref[:, col] + pe
    else:
        # E not 128-aligned (or large batch): build the batch-broadcast pe once
        # per tile (XLU work hidden under DMA) and do ONE full-width store.
        pe_b = jnp.concatenate([pe] * batch, axis=-1)
        o_ref[...] = x_ref[...] + pe_b


def _pe_table_kernel(x_ref, pe_ref, o_ref, *, batch, emb):
    # pe_ref: (TS, E) slice of the host-built pe table.
    _add_pe_store(x_ref, o_ref, pe_ref[...], batch=batch, emb=emb)


def _pe_gen_kernel(freq_ref, x_ref, o_ref, *, batch, emb):
    # Generate pe in-kernel: positions from iota, per-lane frequency row is
    # passed in (bit-identical to the host div_term), sin/cos on the EUP.
    ts = x_ref.shape[0]
    row0 = pl.program_id(0) * ts
    pos = (row0 + jax.lax.broadcasted_iota(jnp.int32, (ts, emb), 0)).astype(jnp.float32)
    lane = jax.lax.broadcasted_iota(jnp.int32, (ts, emb), 1)
    angle = pos * freq_ref[...]                                   # (TS,E) * (1,E)
    pe = jnp.where(jnp.bitwise_and(lane, 1) == 0, jnp.sin(angle), jnp.cos(angle))
    _add_pe_store(x_ref, o_ref, pe.astype(x_ref.dtype), batch=batch, emb=emb)


# --------------------------------------------------------------------------
# Tile sizing / VMEM budgeting (generation aware)
# --------------------------------------------------------------------------
def _tpu_vmem_info():
    try:
        cap = int(pltpu.get_tpu_info().vmem_capacity_bytes)
    except Exception:
        cap = 64 * _MiB                       # conservative (v7x per-TC VMEM)
    return cap, cap <= 96 * _MiB              # <=96 MiB VMEM -> treat as v7x-like


def _pick_ts_and_vmem(S, B, E, dtype, tile_s=None):
    itemsize = jnp.dtype(dtype).itemsize
    sublane = max(8, 32 // itemsize)          # 8 f32, 16 bf16, 32 int8/fp8
    row_bytes = B * E * itemsize
    vmem_cap, v7x_like = _tpu_vmem_info()
    budget = min(vmem_cap // 2, 40 * _MiB)    # never more than half of physical VMEM

    def working_set(t):
        x_tile = t * B * E * itemsize
        pe_tile = t * E * itemsize
        # double-buffered in + out tiles, pe tile (dbl-buffered), one compute temp
        return 2 * (2 * x_tile + pe_tile) + x_tile

    if tile_s is not None:
        ta = _align_up(max(1, int(tile_s)), sublane)   # validate against dtype packing
        ts = S if ta >= S else ta
    else:
        # ~4 MiB of x per step on v7x-like chips (short steps at 3.2 TB/s),
        # ~2 MiB elsewhere (>=85% of HBM roofline measured on v6e).
        target = (4 if v7x_like else 2) * _MiB
        ts = max(sublane, (target // max(row_bytes, 1)) // sublane * sublane)
        while ts > sublane and working_set(ts) > budget:
            ts = max(sublane, (ts // 2) // sublane * sublane)
        if ts >= S:
            ts = S
        if v7x_like:
            # Both TensorCores should stream: grid >= 2 and preferably even.
            grid = pl.cdiv(S, ts)
            if grid == 1 and S >= 2 * sublane:
                ts = _align_up(pl.cdiv(S, 2), sublane)
                grid = pl.cdiv(S, ts)
            if grid > 1 and grid % 2 == 1:
                cand = _align_up(pl.cdiv(S, grid + 1), sublane)
                if cand >= sublane and pl.cdiv(S, cand) % 2 == 0:
                    ts = cand

    # Tight scoped-VMEM limit: actual use + headroom (>= v5e's 16 MiB default).
    vmem_limit = max(16 * _MiB, working_set(ts) + 8 * _MiB)
    return int(ts), int(vmem_limit)


# --------------------------------------------------------------------------
# Forward wrapper
# --------------------------------------------------------------------------
def position_encoder_forward(x, pe, *, tile_s=None):
    """x: (S, B, E) float; pe: (max_len, 1, E) buffer. Eval-mode forward."""
    S, B, E = x.shape
    max_len = pe.shape[0]
    if S > max_len:
        raise ValueError(f"sequence length {S} exceeds pe max_len {max_len}")

    x2d = x.reshape(S, B * E)                         # free row-major view
    ts, vmem_limit = _pick_ts_and_vmem(S, B, E, x.dtype, tile_s=tile_s)
    grid = (pl.cdiv(S, ts),)
    cparams = pltpu.CompilerParams(
        dimension_semantics=("parallel",),            # shard grid across TCs on v7x
        vmem_limit_bytes=vmem_limit,
    )
    x_spec = pl.BlockSpec((ts, B * E), lambda i: (i, 0))
    o_spec = pl.BlockSpec((ts, B * E), lambda i: (i, 0))
    out_shape = jax.ShapeDtypeStruct((S, B * E), x.dtype)

    if B <= 2:
        # Small batch: skip the pe HBM stream, generate pe in-kernel.  The
        # per-lane frequency row is built with the same XLA ops as the buffer,
        # so angles match the table path bit-for-bit (only sin/cos impl differ).
        div_term = jnp.exp(
            jnp.arange(0, E, 2, dtype=jnp.float32) * (-math.log(10000.0) / E))
        freq = jnp.repeat(div_term, 2)[:E].reshape(1, E)      # (1, E) f32
        out2d = pl.pallas_call(
            functools.partial(_pe_gen_kernel, batch=B, emb=E),
            out_shape=out_shape,
            grid=grid,
            in_specs=[pl.BlockSpec((1, E), lambda i: (0, 0)),  # constant block: fetched once
                      x_spec],
            out_specs=o_spec,
            compiler_params=cparams,
        )(freq, x2d)
    else:
        pe2d = pe[:S, 0, :].astype(x.dtype)                    # (S, E) table
        out2d = pl.pallas_call(
            functools.partial(_pe_table_kernel, batch=B, emb=E),
            out_shape=out_shape,
            grid=grid,
            in_specs=[x_spec,
                      pl.BlockSpec((ts, E), lambda i: (i, 0))],
            out_specs=o_spec,
            compiler_params=cparams,
        )(x2d, pe2d)

    return out2d.reshape(S, B, E)


# --------------------------------------------------------------------------
# Self-test
# --------------------------------------------------------------------------
if __name__ == "__main__":
    key = jax.random.PRNGKey(0)

    # 1) B <= 2 -> in-kernel pe generation path (E not a multiple of 128).
    S, B, E, L = 8, 2, 32, 16
    x = jax.random.normal(key, (S, B, E), dtype=jnp.float32)
    pe = make_positional_encoding(L, E)
    out = jax.block_until_ready(position_encoder_forward(x, pe))
    ref = x + pe[:S]
    assert out.shape == (S, B, E)
    assert jnp.allclose(out, ref, atol=1e-5), "mismatch (in-kernel pe path)"

    # 2) B >= 3, E % 128 != 0 -> pe-table DMA, lane-concatenated full-slab
    #    store, forced small tile to exercise a multi-step pipelined grid.
    S2, B2 = 32, 4
    x2 = jax.random.normal(jax.random.fold_in(key, 1), (S2, B2, E), dtype=jnp.float32)
    pe2 = make_positional_encoding(64, E)
    out2 = jax.block_until_ready(position_encoder_forward(x2, pe2, tile_s=8))
    assert jnp.allclose(out2, x2 + pe2[:S2], atol=1e-6), "mismatch (tiled-pe path)"

    # 3) B >= 3, E % 128 == 0 -> pe-table DMA, per-batch lane-aligned chunk stores.
    S3, B3, E3 = 24, 4, 128
    x3 = jax.random.normal(jax.random.fold_in(key, 2), (S3, B3, E3), dtype=jnp.float32)
    pe3 = make_positional_encoding(32, E3)
    out3 = jax.block_until_ready(position_encoder_forward(x3, pe3))
    assert jnp.allclose(out3, x3 + pe3[:S3], atol=1e-6), "mismatch (chunked path)"

    print("KERNEL_OK")
</pallas_src>

<mosaic_0001>
module attributes {stable_mosaic.version = 11 : i64} {
  func.func @_pe_gen_kernel(%arg0: i32, %arg1: memref<1x32xf32, #tpu.memory_space<vmem>>, %arg2: memref<8x64xf32, #tpu.memory_space<vmem>>, %arg3: memref<8x64xf32, #tpu.memory_space<vmem>>) attributes {dimension_semantics = [#tpu.dimension_semantics<parallel>], iteration_bounds = array<i64: 1>, scalar_prefetch = 0 : i64, scratch_operands = 0 : i64, tpu.core_type = #tpu.core_type<tc>, window_params = [{pipeline_mode = #tpu.pipeline_mode<synchronous>, transform_indices = @transform_0, window_bounds = array<i64: 1, 32>}, {transform_indices = @transform_1, window_bounds = array<i64: 8, 64>}, {transform_indices = @transform_2, window_bounds = array<i64: 8, 64>}]} {
    %c8_i32 = arith.constant 8 : i32
    %0 = arith.muli %arg0, %c8_i32 : i32
    %1 = tpu.iota {dimensions = array<i32: 0>} : vector<8x32xi32>
    %2 = vector.broadcast %0 : i32 to vector<8x32xi32>
    %3 = arith.addi %2, %1 : vector<8x32xi32>
    %4 = arith.sitofp %3 : vector<8x32xi32> to vector<8x32xf32>
    %5 = tpu.iota {dimensions = array<i32: 1>} : vector<8x32xi32>
    %c0 = arith.constant 0 : index
    %c0_0 = arith.constant 0 : index
    %6 = vector.load %arg1[%c0, %c0_0] : memref<1x32xf32, #tpu.memory_space<vmem>>, vector<1x32xf32>
    %7 = vector.broadcast %6 : vector<1x32xf32> to vector<8x32xf32>
    %8 = arith.mulf %4, %7 : vector<8x32xf32>
    %c1_i32 = arith.constant 1 : i32
    %9 = vector.broadcast %c1_i32 : i32 to vector<8x32xi32>
    %10 = arith.andi %5, %9 : vector<8x32xi32>
    %c0_i32 = arith.constant 0 : i32
    %11 = vector.broadcast %c0_i32 : i32 to vector<8x32xi32>
    %12 = arith.cmpi eq, %10, %11 : vector<8x32xi32>
    %13 = math.sin %8 : vector<8x32xf32>
    %14 = math.cos %8 : vector<8x32xf32>
    %15 = arith.select %12, %13, %14 : vector<8x32xi1>, vector<8x32xf32>
    %16 = tpu.concatenate %15, %15 in 1 : vector<8x32xf32>, vector<8x32xf32> -> vector<8x64xf32>
    %c0_1 = arith.constant 0 : index
    %c0_2 = arith.constant 0 : index
    %17 = vector.load %arg2[%c0_1, %c0_2] : memref<8x64xf32, #tpu.memory_space<vmem>>, vector<8x64xf32>
    %18 = arith.addf %17, %16 : vector<8x64xf32>
    %c0_3 = arith.constant 0 : index
    %c0_4 = arith.constant 0 : index
    %19 = vector.load %arg3[%c0_3, %c0_4] : memref<8x64xf32, #tpu.memory_space<vmem>>, vector<8x64xf32>
    tpu.vector_store %arg3[%c0_3, %c0_4], %18 {strides = array<i32>} : memref<8x64xf32, #tpu.memory_space<vmem>>, vector<8x64xf32>,
    return
  }
  func.func @transform_0(%arg0: i32) -> (i32, i32) {
    %c0_i32 = arith.constant 0 : i32
    %c0_i32_0 = arith.constant 0 : i32
    %c0_i32_1 = arith.constant 0 : i32
    return %c0_i32, %c0_i32_0 : i32, i32
  }
  func.func @transform_1(%arg0: i32) -> (i32, i32) {
    %c0_i32 = arith.constant 0 : i32
    %c0_i32_0 = arith.constant 0 : i32
    return %arg0, %c0_i32 : i32, i32
  }
  func.func @transform_2(%arg0: i32) -> (i32, i32) {
    %c0_i32 = arith.constant 0 : i32
    %c0_i32_0 = arith.constant 0 : i32
    return %arg0, %c0_i32 : i32, i32
  }
}

</mosaic_0001>

<llo_original>
// kernel: tpu_custom_call.1
$region0: #{tpu_custom_call.1}
  #allocation0 [shape = 'u32[]', space=smem, size = 0x4, offset = 0x4, fixed_abs, tag = 'smem constant byte address 0x4 - core index']
  #allocation1 [shape = 'u32[72,128]{1,0:T(1,128)}', space=vmem, size = 0x9000, scoped, tag = 'internal scratch']
  %s0 = inlined_call_operand.hbm [shape: f32[1,32], index: 0, kind: input, shape index: {}]
  %s1 = inlined_call_operand.hbm [shape: f32[8,64], index: 1, kind: input, shape index: {}]
  %s2 = inlined_call_operand.hbm [shape: f32[8,64], index: 2, kind: output, shape index: {}]
  %s3 = sld [smem:[#allocation0]]
  $region26: #{tpu_custom_call.1} parent=0
    _
  %s5 = ssub.s32 1, %s3
  %s6 = scalar_select 0, %s5, %s3
  $region1: #{tpu_custom_call.1} parent=0
    #allocation2 [shape = 'u8[512]{0}', space=vmem, size = 0x400, scoped, tag = 'input window, operand 0, single buffered']
    #allocation3 [shape = 's32[1]{0}', space=sflag, size = 0x4, scoped, tag = 'scoped memory for tpu_custom_call.1']
    #allocation4 [shape = 's32[1]{0}', space=sflag, size = 0x4, scoped, tag = 'scoped memory for tpu_custom_call.1']
    #allocation5 [shape = 'u8[4096]{0}', space=vmem, size = 0x1000, scoped, tag = 'input window, operand 1, single buffered']
    #allocation6 [shape = 's32[1]{0}', space=sflag, size = 0x4, scoped, tag = 'scoped memory for tpu_custom_call.1']
    #allocation7 [shape = 'u8[4096]{0}', space=vmem, size = 0x1000, scoped, tag = 'output window, operand 0, single buffered']
    %7 = vsyncpa [#allocation3], 0
    %8 = vsyncpa [#allocation6], 0
    %9 = vsyncpa [#allocation4], 0
    // Predicated region
    $region2: #{tpu_custom_call.1} parent=1 // pred_check
      _
    $region3: #{tpu_custom_call.1} parent=1 // pred_check_branch
      %11 = sbr.rel (0) target = $region5
    $region4: #{tpu_custom_call.1} parent=1 // pred_region
      %13 = vsyncadd [#allocation3], 0
      %s15 = sshll.u32 %s0, 4
      %s16 = int_to_ptr.hbm [resolvable:$true] %s15
      %s17 = sshll.u32 [#allocation2], 4
      %s18 = int_to_ptr.vmem [resolvable:$true] %s17
      %20 = dma.hbm_to_vmem [thread:$0]  %s16, 16, %s18, [#allocation3]
    $region5: #{tpu_custom_call.1} parent=1 // pred_fallthru
      _
    // Predicated region
    $region6: #{tpu_custom_call.1} parent=1 // pred_check
      _
    $region7: #{tpu_custom_call.1} parent=1 // pred_check_branch
      %22 = sbr.rel (0) target = $region9
    $region8: #{tpu_custom_call.1} parent=1 // pred_region
      %24 = vsyncadd [#allocation6], 0
      %s26 = sshll.u32 %s1, 4
      %s27 = int_to_ptr.hbm [resolvable:$true] %s26
      %s28 = sshll.u32 [#allocation5], 4
      %s29 = int_to_ptr.vmem [resolvable:$true] %s28
      %31 = dma.hbm_to_vmem [thread:$0]  %s27, 128, %s29, [#allocation6]
    $region9: #{tpu_custom_call.1} parent=1 // pred_fallthru
      _
    // Predicated region
    $region10: #{tpu_custom_call.1} parent=1 // pred_check
      _
    $region11: #{tpu_custom_call.1} parent=1 // pred_check_branch
      %33 = sbr.rel (0) target = $region13
    $region12: #{tpu_custom_call.1} parent=1 // pred_region
      %35 = dma.done [#allocation3], 16
    $region13: #{tpu_custom_call.1} parent=1 // pred_fallthru
      _
    // Predicated region
    $region14: #{tpu_custom_call.1} parent=1 // pred_check
      _
    $region15: #{tpu_custom_call.1} parent=1 // pred_check_branch
      %37 = sbr.rel (0) target = $region17
    $region16: #{tpu_custom_call.1} parent=1 // pred_region
      %39 = dma.done [#allocation6], 128
    $region17: #{tpu_custom_call.1} parent=1 // pred_fallthru
      _
    %s40 = smul.u32 0, 8
    %v41 = vlaneseq
    %v42 = vshrl.u32 %v41, 7
    %v43 = vstv %s40
    %v44 = vadd.s32 %v43, %v42
    %v45 = vcvt.s32.f32 %v44
    %v46 = vlaneseq
    %v47 = vand.u32 %v46, 127
    %v48 = vld [vmem:[#allocation2] sm:$0x1]
    %v50 = vperm.slane %v48, 0
    %v52 = vmul.f32 %v45, %v50
    %v53 = vand.u32 %v47, 1
    %vm54 = vcmp.eq.s32.totalorder %v53, 0
    %v55 = vand.u32 2147483647, %v52
    %vm56 = vcmp.le.f32.partialorder %v55, 0.7853982
    %vm57 = vcmp.lt.s32.totalorder %v52, 0
    %v58 = vand.u32 %v52, 2139095040
    %v59 = vshrl.u32 %v58, 23
    %v60 = vsub.s32 %v59, 127
    %v61 = vand.u32 2147483647, %v52
    %v62 = vand.u32 %v61, 8388607
    %v63 = vor.u32 %v62, 8388608
    %v64 = vsub.s32 0, %v63
    %v65 = vadd.s32 %v60, 1
    %vm66 = vcmp.gt.s32.totalorder %v65, 0
    %v67 = vsel %vm66, %v65, 0
    %v68 = vshrl.u32 %v67, 5
    %v69 = vand.u32 %v67, 31
    %v70 = vsub.s32 32, %v69
    %v71 = vshrl.u32 683565275, %v70
    %v72 = vshll.u32 683565275, %v69
    %v73 = vshrl.u32 2475754826, %v70
    %v74 = vor.u32 %v72, %v73
    %v75 = vshll.u32 2475754826, %v69
    %v76 = vshrl.u32 2131351028, %v70
    %v77 = vor.u32 %v75, %v76
    %v78 = vshll.u32 2131351028, %v69
    %v79 = vshrl.u32 2102212464, %v70
    %v80 = vor.u32 %v78, %v79
    %v81 = vshll.u32 2102212464, %v69
    %v82 = vshrl.u32 920167782, %v70
    %v83 = vor.u32 %v81, %v82
    %v84 = vshll.u32 920167782, %v69
    %v85 = vshrl.u32 1326507024, %v70
    %v86 = vor.u32 %v84, %v85
    %vm87 = vcmp.lt.s32.totalorder %v68, 1
    %vm88 = vcmp.lt.s32.totalorder %v68, 2
    %vm89 = vcmp.lt.s32.totalorder %v68, 3
    %vm90 = vcmp.lt.s32.totalorder %v68, 4
    %v91 = vsel %vm87, %v71, %v74
    %v92 = vsel %vm90, %v80, 2102212464
    %v93 = vsel %vm89, %v77, %v92
    %v94 = vsel %vm88, %v91, %v93
    %v95 = vsel %vm87, %v74, %v77
    %v96 = vsel %vm90, %v83, 920167782
    %v97 = vsel %vm89, %v80, %v96
    %v98 = vsel %vm88, %v95, %v97
    %v99 = vsel %vm87, %v77, %v80
    %v100 = vsel %vm90, %v86, 1326507024
    %v101 = vsel %vm89, %v83, %v100
    %v102 = vsel %vm88, %v99, %v101
    %v103 = vshll.u32 %v63, 8
    %v104 = vand.u32 %v103, 65535
    %v105 = vshrl.u32 %v103, 16
    %v106 = vand.u32 %v102, 65535
    %v107 = vshrl.u32 %v102, 16
    %v108 = vmul.u32 %v104, %v106
    %v109 = vmul.u32 %v104, %v107
    %v110 = vmul.u32 %v105, %v106
    %v111 = vmul.u32 %v105, %v107
    %v112 = vshll.u32 %v109, 16
    %v113 = vshrl.u32 %v109, 16
    %v114 = vshll.u32 %v110, 16
    %v115 = vshrl.u32 %v110, 16
    %vm116 = vc.u32 %v108, %v112
    %v117 = vsel %vm116, 1, 0
    %v118 = vadd.s32 %v108, %v112
    %v119 = vadd.s32 %v111, %v117
    %vm120 = vc.u32 %v118, %v114
    %v121 = vsel %vm120, 1, 0
    %v122 = vadd.s32 %v118, %v114
    %v123 = vadd.s32 %v119, %v121
    %v124 = vadd.s32 %v123, %v113
    %v125 = vadd.s32 %v124, %v115
    %v126 = vand.u32 %v103, 65535
    %v127 = vshrl.u32 %v103, 16
    %v128 = vand.u32 %v98, 65535
    %v129 = vshrl.u32 %v98, 16
    %v130 = vmul.u32 %v126, %v128
    %v131 = vmul.u32 %v126, %v129
    %v132 = vmul.u32 %v127, %v128
    %v133 = vmul.u32 %v127, %v129
    %v134 = vshll.u32 %v131, 16
    %v135 = vshrl.u32 %v131, 16
    %v136 = vshll.u32 %v132, 16
    %v137 = vshrl.u32 %v132, 16
    %vm138 = vc.u32 %v130, %v134
    %v139 = vsel %vm138, 1, 0
    %v140 = vadd.s32 %v130, %v134
    %v141 = vadd.s32 %v133, %v139
    %vm142 = vc.u32 %v140, %v136
    %v143 = vsel %vm142, 1, 0
    %v144 = vadd.s32 %v140, %v136
    %v145 = vadd.s32 %v141, %v143
    %v146 = vadd.s32 %v145, %v135
    %v147 = vadd.s32 %v146, %v137
    %v148 = vmul.u32 %v103, %v94
    %v149 = vadd.s32 %v125, %v144
    %vm150 = vc.u32 %v125, %v144
    %v151 = vadd.s32 %v147, 1
    %v152 = vsel %vm150, %v151, %v147
    %v153 = vadd.s32 %v148, %v152
    %v154 = vadd.s32 %v153, 536870912
    %v155 = vshrl.u32 %v154, 30
    %v156 = vshll.u32 %v155, 30
    %v157 = vsub.s32 %v153, %v156
    %vm158 = vcmp.lt.s32.totalorder %v157, 0
    %v159 = vsub.s32 0, %v157
    %v160 = vsel %vm158, %v159, %v157
    %v161 = vclz %v160
    %v162 = vsub.s32 %v161, 2
    %vm163 = vcmp.gt.s32.totalorder 0, %v162
    %v164 = vsel %vm163, 0, %v162
    %v165 = vsub.s32 32, %v164
    %v166 = vshll.u32 %v157, %v164
    %v167 = vshrl.u32 %v149, %v165
    %v168 = vor.u32 %v166, %v167
    %v169 = vsub.s32 4294967266, %v164
    %v170 = vadd.s32 %v169, 127
    %v171 = vshll.u32 %v170, 23
    %v172 = vor.u32 4788187, %v171
    %v173 = vand.u32 2147483647, %v172
    %v175 = vcvt.s32.f32 %v168
    %v176 = vmul.f32 %v175, %v173
    %v177 = vxor.u32 %v176, 2147483648
    %v178 = vsel %vm57, %v177, %v176
    %v179 = vsub.s32 4, %v155
    %v180 = vsel %vm57, %v179, %v155
    %v181 = vsel %vm56, %v52, %v178
    %v182 = vsel %vm56, 0, %v180
    %v183 = vmul.f32 %v181, %v181
    %v184 = vmul.f32 %v183, -0.001358992
    %v185 = vadd.f32 %v184, 0.041655596
    %v186 = vmul.f32 %v183, %v185
    %v187 = vadd.f32 %v186, -0.4999988
    %v188 = vmul.f32 %v183, %v187
    %v189 = vadd.f32 1.0, %v188
    %v190 = vmul.f32 %v181, %v181
    %v191 = vmul.f32 %v190, -0.00019511016
    %v192 = vadd.f32 %v191, 0.008332121
    %v193 = vmul.f32 %v190, %v192
    %v194 = vadd.f32 %v193, -0.16666654
    %v195 = vmul.f32 %v190, %v194
    %v196 = vadd.f32 %v195, 1.0
    %v197 = vmul.f32 %v196, %v181
    %vm198 = vweird.f32 %v52
    %v199 = vadd.s32 %v182, 3
    %v200 = vand.u32 %v199, 3
    %vm201 = vcmp.lt.s32.totalorder %v200, 2
    %vm202 = vcmp.eq.s32.totalorder %v200, 0
    %v203 = vxor.u32 %v197, 2147483648
    %v204 = vsel %vm202, %v189, %v203
    %vm205 = vcmp.eq.s32.totalorder %v200, 2
    %v206 = vxor.u32 %v189, 2147483648
    %v207 = vsel %vm205, %v206, %v197
    %v208 = vsel %vm201, %v204, %v207
    %v209 = vsel %vm198, nan, %v208
    %v210 = vand.u32 2147483647, %v52
    %vm211 = vcmp.le.f32.partialorder %v210, 0.7853982
    %vm212 = vcmp.lt.s32.totalorder %v52, 0
    %v213 = vand.u32 %v52, 2139095040
    %v214 = vshrl.u32 %v213, 23
    %v215 = vsub.s32 %v214, 127
    %v216 = vand.u32 2147483647, %v52
    %v217 = vand.u32 %v216, 8388607
    %v218 = vor.u32 %v217, 8388608
    %v219 = vsub.s32 0, %v218
    %v220 = vadd.s32 %v215, 1
    %vm221 = vcmp.gt.s32.totalorder %v220, 0
    %v222 = vsel %vm221, %v220, 0
    %v223 = vshrl.u32 %v222, 5
    %v224 = vand.u32 %v222, 31
    %v225 = vsub.s32 32, %v224
    %v226 = vshrl.u32 683565275, %v225
    %v227 = vshll.u32 683565275, %v224
    %v228 = vshrl.u32 2475754826, %v225
    %v229 = vor.u32 %v227, %v228
    %v230 = vshll.u32 2475754826, %v224
    %v231 = vshrl.u32 2131351028, %v225
    %v232 = vor.u32 %v230, %v231
    %v233 = vshll.u32 2131351028, %v224
    %v234 = vshrl.u32 2102212464, %v225
    %v235 = vor.u32 %v233, %v234
    %v236 = vshll.u32 2102212464, %v224
    %v237 = vshrl.u32 920167782, %v225
    %v238 = vor.u32 %v236, %v237
    %v239 = vshll.u32 920167782, %v224
    %v240 = vshrl.u32 1326507024, %v225
    %v241 = vor.u32 %v239, %v240
    %vm242 = vcmp.lt.s32.totalorder %v223, 1
    %vm243 = vcmp.lt.s32.totalorder %v223, 2
    %vm244 = vcmp.lt.s32.totalorder %v223, 3
    %vm245 = vcmp.lt.s32.totalorder %v223, 4
    %v246 = vsel %vm242, %v226, %v229
    %v247 = vsel %vm245, %v235, 2102212464
    %v248 = vsel %vm244, %v232, %v247
    %v249 = vsel %vm243, %v246, %v248
    %v250 = vsel %vm242, %v229, %v232
    %v251 = vsel %vm245, %v238, 920167782
    %v252 = vsel %vm244, %v235, %v251
    %v253 = vsel %vm243, %v250, %v252
    %v254 = vsel %vm242, %v232, %v235
    %v255 = vsel %vm245, %v241, 1326507024
    %v256 = vsel %vm244, %v238, %v255
    %v257 = vsel %vm243, %v254, %v256
    %v258 = vshll.u32 %v218, 8
    %v259 = vand.u32 %v258, 65535
    %v260 = vshrl.u32 %v258, 16
    %v261 = vand.u32 %v257, 65535
    %v262 = vshrl.u32 %v257, 16
    %v263 = vmul.u32 %v259, %v261
    %v264 = vmul.u32 %v259, %v262
    %v265 = vmul.u32 %v260, %v261
    %v266 = vmul.u32 %v260, %v262
    %v267 = vshll.u32 %v264, 16
    %v268 = vshrl.u32 %v264, 16
    %v269 = vshll.u32 %v265, 16
    %v270 = vshrl.u32 %v265, 16
    %vm271 = vc.u32 %v263, %v267
    %v272 = vsel %vm271, 1, 0
    %v273 = vadd.s32 %v263, %v267
    %v274 = vadd.s32 %v266, %v272
    %vm275 = vc.u32 %v273, %v269
    %v276 = vsel %vm275, 1, 0
    %v277 = vadd.s32 %v273, %v269
    %v278 = vadd.s32 %v274, %v276
    %v279 = vadd.s32 %v278, %v268
    %v280 = vadd.s32 %v279, %v270
    %v281 = vand.u32 %v258, 65535
    %v282 = vshrl.u32 %v258, 16
    %v283 = vand.u32 %v253, 65535
    %v284 = vshrl.u32 %v253, 16
    %v285 = vmul.u32 %v281, %v283
    %v286 = vmul.u32 %v281, %v284
    %v287 = vmul.u32 %v282, %v283
    %v288 = vmul.u32 %v282, %v284
    %v289 = vshll.u32 %v286, 16
    %v290 = vshrl.u32 %v286, 16
    %v291 = vshll.u32 %v287, 16
    %v292 = vshrl.u32 %v287, 16
    %vm293 = vc.u32 %v285, %v289
    %v294 = vsel %vm293, 1, 0
    %v295 = vadd.s32 %v285, %v289
    %v296 = vadd.s32 %v288, %v294
    %vm297 = vc.u32 %v295, %v291
    %v298 = vsel %vm297, 1, 0
    %v299 = vadd.s32 %v295, %v291
    %v300 = vadd.s32 %v296, %v298
    %v301 = vadd.s32 %v300, %v290
    %v302 = vadd.s32 %v301, %v292
    %v303 = vmul.u32 %v258, %v249
    %v304 = vadd.s32 %v280, %v299
    %vm305 = vc.u32 %v280, %v299
    %v306 = vadd.s32 %v302, 1
    %v307 = vsel %vm305, %v306, %v302
    %v308 = vadd.s32 %v303, %v307
    %v309 = vadd.s32 %v308, 536870912
    %v310 = vshrl.u32 %v309, 30
    %v311 = vshll.u32 %v310, 30
    %v312 = vsub.s32 %v308, %v311
    %vm313 = vcmp.lt.s32.totalorder %v312, 0
    %v314 = vsub.s32 0, %v312
    %v315 = vsel %vm313, %v314, %v312
    %v316 = vclz %v315
    %v317 = vsub.s32 %v316, 2
    %vm318 = vcmp.gt.s32.totalorder 0, %v317
    %v319 = vsel %vm318, 0, %v317
    %v320 = vsub.s32 32, %v319
    %v321 = vshll.u32 %v312, %v319
    %v322 = vshrl.u32 %v304, %v320
    %v323 = vor.u32 %v321, %v322
    %v324 = vsub.s32 4294967266, %v319
    %v325 = vadd.s32 %v324, 127
    %v326 = vshll.u32 %v325, 23
    %v327 = vor.u32 4788187, %v326
    %v328 = vand.u32 2147483647, %v327
    %v330 = vcvt.s32.f32 %v323
    %v331 = vmul.f32 %v330, %v328
    %v332 = vxor.u32 %v331, 2147483648
    %v333 = vsel %vm212, %v332, %v331
    %v334 = vsub.s32 4, %v310
    %v335 = vsel %vm212, %v334, %v310
    %v336 = vsel %vm211, %v52, %v333
    %v337 = vsel %vm211, 0, %v335
    %v338 = vmul.f32 %v336, %v336
    %v339 = vmul.f32 %v338, -0.001358992
    %v340 = vadd.f32 %v339, 0.041655596
    %v341 = vmul.f32 %v338, %v340
    %v342 = vadd.f32 %v341, -0.4999988
    %v343 = vmul.f32 %v338, %v342
    %v344 = vadd.f32 1.0, %v343
    %v345 = vmul.f32 %v336, %v336
    %v346 = vmul.f32 %v345, -0.00019511016
    %v347 = vadd.f32 %v346, 0.008332121
    %v348 = vmul.f32 %v345, %v347
    %v349 = vadd.f32 %v348, -0.16666654
    %v350 = vmul.f32 %v345, %v349
    %v351 = vadd.f32 %v350, 1.0
    %v352 = vmul.f32 %v351, %v336
    %vm353 = vweird.f32 %v52
    %v354 = vand.u32 %v337, 3
    %vm355 = vcmp.lt.s32.totalorder %v354, 2
    %vm356 = vcmp.eq.s32.totalorder %v354, 0
    %v357 = vxor.u32 %v352, 2147483648
    %v358 = vsel %vm356, %v344, %v357
    %vm359 = vcmp.eq.s32.totalorder %v354, 2
    %v360 = vxor.u32 %v344, 2147483648
    %v361 = vsel %vm359, %v360, %v352
    %v362 = vsel %vm355, %v358, %v361
    %v363 = vsel %vm353, nan, %v362
    %v364 = vsel %vm54, %v209, %v363
    %366 = vrot.lane.b32.xlu0 %v364, 32
    %v367 = vpop.permute.xlu0 %366
    %vm369 = vcmask 261120
    %v370 = vsel %vm369, %v364, %v367
    %v371 = vld [vmem:[#allocation5] sm:$0xff]
    %v372 = vadd.f32 %v371, %v370
    %vm373 = vcmask 523264
    %374 = vst.msk [vmem:[#allocation7] sm:$0xff] %vm373, %v372
    // Predicated region
    $region18: #{tpu_custom_call.1} parent=1 // pred_check
      _
    $region19: #{tpu_custom_call.1} parent=1 // pred_check_branch
      %376 = sbr.rel (0) target = $region21
    $region20: #{tpu_custom_call.1} parent=1 // pred_region
      %378 = vsyncadd [#allocation4], 0
      %s380 = sshll.u32 [#allocation7], 4
      %s381 = int_to_ptr.vmem [resolvable:$true] %s380
      %s382 = sshll.u32 %s2, 4
      %s383 = int_to_ptr.hbm [resolvable:$true] %s382
      %385 = dma.vmem_to_hbm [thread:$0]  %s381, 128, %s383, [#allocation4]
    $region21: #{tpu_custom_call.1} parent=1 // pred_fallthru
      _
    // Predicated region
    $region22: #{tpu_custom_call.1} parent=1 // pred_check
      _
    $region23: #{tpu_custom_call.1} parent=1 // pred_check_branch
      %387 = sbr.rel (0) target = $region25
    $region24: #{tpu_custom_call.1} parent=1 // pred_region
      %389 = dma.done [#allocation4], 128
    $region25: #{tpu_custom_call.1} parent=1 // pred_fallthru
      _
    %390 = vsyncpa [#allocation3], 1
    %391 = vsyncpa [#allocation6], 1
    %392 = vsyncpa [#allocation4], 1

</llo_original>
